<compile_context>
chip_gen: v7x
topology: tpu7x:2x2x1
jax: 0.10.0
libtpu: 0.0.40
codegen_flags: <defaults>
</compile_context>

<pallas_src>
import jax
import jax.numpy as jnp
from jax.experimental import pallas as pl
from jax.experimental.pallas import tpu as pltpu

LANE = 128


def _round_up(x: int, m: int) -> int:
    return ((x + m - 1) // m) * m


def _lowest(dtype):
    dtype = jnp.dtype(dtype)
    if jnp.issubdtype(dtype, jnp.floating):
        return float(jnp.finfo(dtype).min)
    return int(jnp.iinfo(dtype).min)


def _vmem_capacity_bytes() -> int:
    """Physical VMEM per TensorCore; fall back to the smallest generation (v7x: 64 MiB)."""
    try:
        info = pltpu.get_tpu_info()
        cap = getattr(info, "vmem_capacity_bytes", None)
        if cap:
            return int(cap)
    except Exception:
        pass
    return 64 * 1024 * 1024


def _make_kernel(tile_s: int, valid_last: int, c_group: int, lowest):
    """Build the kernel with the static spatial-tile geometry baked in."""
    n_chunks = tile_s // LANE

    def kernel(x_ref, w1t_ref, w2t_ref, o_ref, acc_ref):
        # Grid axes: 0 = N tiles ("parallel"), 1 = spatial tiles ("arbitrary").
        s_idx = pl.program_id(1)
        last = pl.num_programs(1) - 1
        c = x_ref.shape[1]

        @pl.when(s_idx == 0)
        def _init():
            acc_ref[...] = jnp.full(acc_ref.shape, lowest, acc_ref.dtype)

        def fold(masked: bool):
            # Fold this input tile into the small (tile_n, C, 128) accumulator.
            # acc is read once / written once per C-group; the lane-chunk loop is
            # statically unrolled (1 extra vld + 1 VPU max per input vreg).
            for cg0 in range(0, c, c_group):
                cg1 = min(cg0 + c_group, c)
                acc = acc_ref[:, cg0:cg1, :]
                for k in range(n_chunks):
                    lo = k * LANE
                    if masked and lo >= valid_last:
                        break  # statically skip wholly out-of-range lane chunks
                    chunk = x_ref[:, cg0:cg1, lo:lo + LANE]
                    if masked and lo + LANE > valid_last:
                        # Ragged tail: out-of-range lanes hold stale VMEM — mask the
                        # INPUT chunk before the max so garbage/NaN can't leak in.
                        lane = jax.lax.broadcasted_iota(jnp.int32, chunk.shape, 2)
                        chunk = jnp.where(lane < (valid_last - lo), chunk, lowest)
                    acc = jnp.maximum(acc, chunk)
                acc_ref[:, cg0:cg1, :] = acc

        @pl.when(s_idx < last)
        def _fold_interior():
            fold(masked=False)

        @pl.when(s_idx == last)
        def _fold_edge_and_epilogue():
            fold(masked=True)
            # One cross-lane reduce over the 128-lane accumulator -> (tile_n, C).
            pooled = jnp.max(acc_ref[...], axis=-1).astype(jnp.float32)
            # fc1 (pre-transposed weight: (C, C//r)) + ReLU
            h = jnp.dot(pooled, w1t_ref[...].astype(jnp.float32),
                        preferred_element_type=jnp.float32)
            h = jnp.maximum(h, 0.0)
            # fc2 (pre-transposed + lane-padded weight: (C//r, C_pad))
            out = jnp.dot(h, w2t_ref[...].astype(jnp.float32),
                          preferred_element_type=jnp.float32)
            o_ref[...] = jax.nn.sigmoid(out)[:, None, :].astype(o_ref.dtype)

    return kernel


def channel_attention(x, w1, w2, *, tile_s_max=None):
    """x: (N, C, H, W); w1: (C//r, C); w2: (C, C//r). Returns (N, C, 1, 1)."""
    n, c, h, w = x.shape
    cr = w1.shape[0]
    dtype = x.dtype
    itemsize = jnp.dtype(dtype).itemsize
    lowest = _lowest(dtype)

    # Lane-dense output: pad the output-channel dim up to a multiple of 128 so the
    # final store is an unmasked vst; sliced back off in JAX below.
    c_pad = _round_up(max(c, LANE), LANE)

    # Pre-transpose weights once here (keeps MXU operands lane-aligned).
    w1_t = jnp.transpose(w1)                                    # (C, C//r)
    w2_t = jnp.pad(jnp.transpose(w2), ((0, 0), (0, c_pad - c)))  # (C//r, C_pad)

    # Batch tile: largest divisor of N in {8, 4, 2} that still leaves >= 2 N-tiles
    # (keeps the "parallel" axis usable for megacore). No remainder possible.
    tile_n = 1
    for cand in (8, 4, 2):
        if n % cand == 0 and n // cand >= 2:
            tile_n = cand
            break

    s = h * w
    x_flat = x.reshape(n, c, s)
    if s < LANE:
        # Tiny spatial extent: pad once to the minimum 128-lane block (negligible).
        x_flat = jnp.pad(x_flat, ((0, 0), (0, 0), (0, LANE - s)),
                         constant_values=lowest)
        s_eff = LANE
    else:
        s_eff = s  # NO full-tensor pad: ragged tail is masked inside the kernel.

    # Spatial tile: ~2 MiB per pipelined input buffer; >=512 lanes already sits at
    # the HBM roofline, so huge VMEM-filling tiles buy nothing (and risk v7x limits).
    target_bytes = 2 * 1024 * 1024
    tile_s = target_bytes // max(tile_n * c * itemsize, 1)
    tile_s = max(LANE, (tile_s // LANE) * LANE)
    tile_s = min(tile_s, 2048)
    if tile_s_max is not None:
        tile_s = max(LANE, min(tile_s, (tile_s_max // LANE) * LANE))
    tile_s = min(tile_s, (s_eff // LANE) * LANE)   # block never larger than the array

    num_s_tiles = pl.cdiv(s_eff, tile_s)
    valid_last = s_eff - (num_s_tiles - 1) * tile_s   # static valid lanes in last tile

    # C-group size for the fold: keep tile_n * c_group <= 64 sublanes live in vregs.
    c_group = max(8, ((64 // tile_n) // 8) * 8)

    grid = (n // tile_n, num_s_tiles)

    # vmem limit from the actual working set (+25% and fixed headroom), capped to HW.
    in_bytes = tile_n * c * tile_s * itemsize
    w_itemsize = jnp.dtype(w1.dtype).itemsize
    weight_bytes = (c * cr + cr * c_pad) * w_itemsize
    out_bytes = tile_n * c_pad * itemsize
    acc_bytes = tile_n * c * LANE * itemsize
    working = 2 * in_bytes + 2 * weight_bytes + 2 * out_bytes + acc_bytes
    cap = _vmem_capacity_bytes()
    vmem_limit = int(min(cap, max(working * 5 // 4 + 8 * 1024 * 1024,
                                  32 * 1024 * 1024)))

    kernel = _make_kernel(tile_s, valid_last, c_group, lowest)

    out = pl.pallas_call(
        kernel,
        out_shape=jax.ShapeDtypeStruct((n, 1, c_pad), dtype),
        grid_spec=pltpu.PrefetchScalarGridSpec(
            num_scalar_prefetch=0,
            grid=grid,
            in_specs=[
                pl.BlockSpec((tile_n, c, tile_s), lambda i, j: (i, 0, j)),
                pl.BlockSpec((c, cr), lambda i, j: (0, 0)),
                pl.BlockSpec((cr, c_pad), lambda i, j: (0, 0)),
            ],
            out_specs=pl.BlockSpec((tile_n, 1, c_pad), lambda i, j: (i, 0, 0)),
            scratch_shapes=[pltpu.VMEM((tile_n, c, LANE), dtype)],
        ),
        compiler_params=pltpu.CompilerParams(
            dimension_semantics=("parallel", "arbitrary"),
            vmem_limit_bytes=vmem_limit,
        ),
    )(x_flat, w1_t, w2_t)

    return out[:, 0, :c].reshape(n, c, 1, 1)


def _reference(x, w1, w2):
    # Pure-JAX reference mirroring the PyTorch forward.
    pooled = jnp.max(x, axis=(2, 3))                  # (N, C)
    h = jnp.maximum(pooled @ w1.T, 0.0)               # (N, C//r)
    out = jax.nn.sigmoid(h @ w2.T)                    # (N, C)
    return out[:, :, None, None]


if __name__ == "__main__":
    key = jax.random.PRNGKey(0)
    k_x, k_w1, k_w2 = jax.random.split(key, 3)

    N, C, H, W = 2, 4, 16, 16
    ratio = 4
    Cr = C // ratio

    x = jax.random.normal(k_x, (N, C, H, W), dtype=jnp.float32)
    # Conv2d(C, C//4, 1, bias=False).weight -> (C//4, C, 1, 1); squeezed to (C//4, C)
    w1 = jax.random.normal(k_w1, (Cr, C), dtype=jnp.float32) * 0.1
    # Conv2d(C//4, C, 1, bias=False).weight -> (C, C//4, 1, 1); squeezed to (C, C//4)
    w2 = jax.random.normal(k_w2, (C, Cr), dtype=jnp.float32) * 0.1

    ref = _reference(x, w1, w2)

    # Default (single spatial tile for this toy size).
    out = jax.block_until_ready(channel_attention(x, w1, w2))
    assert out.shape == (N, C, 1, 1), out.shape
    assert jnp.allclose(out, ref, atol=1e-5, rtol=1e-5)

    # Force multiple spatial tiles (exercises init / running-max / gated epilogue).
    out_tiled = jax.block_until_ready(channel_attention(x, w1, w2, tile_s_max=128))
    assert jnp.allclose(out_tiled, ref, atol=1e-5, rtol=1e-5)

    # Small ragged spatial size (< 128 lanes -> cheap one-block pad path).
    k_x2, k_w12, k_w22 = jax.random.split(jax.random.PRNGKey(0), 3)
    N2, C2, H2, W2 = 2, 8, 9, 9
    x2 = jax.random.normal(k_x2, (N2, C2, H2, W2), dtype=jnp.float32)
    w12 = jax.random.normal(k_w12, (C2 // ratio, C2), dtype=jnp.float32) * 0.1
    w22 = jax.random.normal(k_w22, (C2, C2 // ratio), dtype=jnp.float32) * 0.1
    out2 = jax.block_until_ready(channel_attention(x2, w12, w22))
    assert jnp.allclose(out2, _reference(x2, w12, w22), atol=1e-5, rtol=1e-5)

    # Ragged spatial size >= 128 (no wrapper pad; exercises the in-kernel -inf mask
    # of the overhanging edge tile, with and without multiple interior tiles).
    N3, C3, H3, W3 = 2, 8, 23, 23     # s = 529 -> tiles of 512 + masked tail of 17
    x3 = jax.random.normal(jax.random.PRNGKey(3), (N3, C3, H3, W3), dtype=jnp.float32)
    w13 = jax.random.normal(jax.random.PRNGKey(4), (C3 // ratio, C3), dtype=jnp.float32) * 0.1
    w23 = jax.random.normal(jax.random.PRNGKey(5), (C3, C3 // ratio), dtype=jnp.float32) * 0.1
    ref3 = _reference(x3, w13, w23)
    out3 = jax.block_until_ready(channel_attention(x3, w13, w23))
    assert jnp.allclose(out3, ref3, atol=1e-5, rtol=1e-5)
    out3b = jax.block_until_ready(channel_attention(x3, w13, w23, tile_s_max=128))
    assert jnp.allclose(out3b, ref3, atol=1e-5, rtol=1e-5)

    print("KERNEL_OK")
</pallas_src>

<mosaic_0001>
module attributes {stable_mosaic.version = 11 : i64} {
  func.func @kernel(%arg0: i32, %arg1: i32, %arg2: memref<1x4x256xf32, #tpu.memory_space<vmem>>, %arg3: memref<4x1xf32, #tpu.memory_space<vmem>>, %arg4: memref<1x128xf32, #tpu.memory_space<vmem>>, %arg5: memref<1x1x128xf32, #tpu.memory_space<vmem>>, %arg6: memref<1x4x128xf32, #tpu.memory_space<vmem>>) attributes {dimension_semantics = [#tpu.dimension_semantics<parallel>, #tpu.dimension_semantics<arbitrary>], iteration_bounds = array<i64: 2, 1>, scalar_prefetch = 0 : i64, scratch_operands = 1 : i64, tpu.core_type = #tpu.core_type<tc>, window_params = [{transform_indices = @transform_0, window_bounds = array<i64: 1, 4, 256>}, {pipeline_mode = #tpu.pipeline_mode<synchronous>, transform_indices = @transform_1, window_bounds = array<i64: 4, 1>}, {pipeline_mode = #tpu.pipeline_mode<synchronous>, transform_indices = @transform_2, window_bounds = array<i64: 1, 128>}, {transform_indices = @transform_3, window_bounds = array<i64: 1, 1, 128>}]} {
    %c0_i32 = arith.constant 0 : i32
    %0 = arith.cmpi eq, %arg1, %c0_i32 : i32
    %1 = arith.extui %0 : i1 to i32
    %c0_i32_0 = arith.constant 0 : i32
    %2 = arith.cmpi ne, %1, %c0_i32_0 : i32
    scf.if %2 {
      %cst = arith.constant -3.40282347E+38 : f32
      %9 = vector.broadcast %cst : f32 to vector<1x4x128xf32>
      %c0 = arith.constant 0 : index
      %c0_5 = arith.constant 0 : index
      %c0_6 = arith.constant 0 : index
      %10 = vector.load %arg6[%c0, %c0_5, %c0_6] : memref<1x4x128xf32, #tpu.memory_space<vmem>>, vector<1x4x128xf32>
      tpu.vector_store %arg6[%c0, %c0_5, %c0_6], %9 {strides = array<i32>} : memref<1x4x128xf32, #tpu.memory_space<vmem>>, vector<1x4x128xf32>,
    } else {
    }
    %c0_i32_1 = arith.constant 0 : i32
    %3 = arith.cmpi slt, %arg1, %c0_i32_1 : i32
    %4 = arith.extui %3 : i1 to i32
    %c0_i32_2 = arith.constant 0 : i32
    %5 = arith.cmpi ne, %4, %c0_i32_2 : i32
    scf.if %5 {
      %c0 = arith.constant 0 : index
      %c0_5 = arith.constant 0 : index
      %c0_6 = arith.constant 0 : index
      %9 = vector.load %arg6[%c0, %c0_5, %c0_6] : memref<1x4x128xf32, #tpu.memory_space<vmem>>, vector<1x4x128xf32>
      %c0_7 = arith.constant 0 : index
      %c0_8 = arith.constant 0 : index
      %c0_9 = arith.constant 0 : index
      %10 = vector.load %arg2[%c0_7, %c0_8, %c0_9] : memref<1x4x256xf32, #tpu.memory_space<vmem>>, vector<1x4x128xf32>
      %11 = arith.maximumf %9, %10 : vector<1x4x128xf32>
      %c0_10 = arith.constant 0 : index
      %c0_11 = arith.constant 0 : index
      %c128 = arith.constant 128 : index
      %12 = vector.load %arg2[%c0_10, %c0_11, %c128] : memref<1x4x256xf32, #tpu.memory_space<vmem>>, vector<1x4x128xf32>
      %13 = arith.maximumf %11, %12 : vector<1x4x128xf32>
      %c0_12 = arith.constant 0 : index
      %c0_13 = arith.constant 0 : index
      %c0_14 = arith.constant 0 : index
      %14 = vector.load %arg6[%c0_12, %c0_13, %c0_14] : memref<1x4x128xf32, #tpu.memory_space<vmem>>, vector<1x4x128xf32>
      tpu.vector_store %arg6[%c0_12, %c0_13, %c0_14], %13 {strides = array<i32>} : memref<1x4x128xf32, #tpu.memory_space<vmem>>, vector<1x4x128xf32>,
    } else {
    }
    %c0_i32_3 = arith.constant 0 : i32
    %6 = arith.cmpi eq, %arg1, %c0_i32_3 : i32
    %7 = arith.extui %6 : i1 to i32
    %c0_i32_4 = arith.constant 0 : i32
    %8 = arith.cmpi ne, %7, %c0_i32_4 : i32
    scf.if %8 {
      %c0 = arith.constant 0 : index
      %c0_5 = arith.constant 0 : index
      %c0_6 = arith.constant 0 : index
      %9 = vector.load %arg6[%c0, %c0_5, %c0_6] : memref<1x4x128xf32, #tpu.memory_space<vmem>>, vector<1x4x128xf32>
      %c0_7 = arith.constant 0 : index
      %c0_8 = arith.constant 0 : index
      %c0_9 = arith.constant 0 : index
      %10 = vector.load %arg2[%c0_7, %c0_8, %c0_9] : memref<1x4x256xf32, #tpu.memory_space<vmem>>, vector<1x4x128xf32>
      %11 = arith.maximumf %9, %10 : vector<1x4x128xf32>
      %c0_10 = arith.constant 0 : index
      %c0_11 = arith.constant 0 : index
      %c128 = arith.constant 128 : index
      %12 = vector.load %arg2[%c0_10, %c0_11, %c128] : memref<1x4x256xf32, #tpu.memory_space<vmem>>, vector<1x4x128xf32>
      %13 = arith.maximumf %11, %12 : vector<1x4x128xf32>
      %c0_12 = arith.constant 0 : index
      %c0_13 = arith.constant 0 : index
      %c0_14 = arith.constant 0 : index
      %14 = vector.load %arg6[%c0_12, %c0_13, %c0_14] : memref<1x4x128xf32, #tpu.memory_space<vmem>>, vector<1x4x128xf32>
      tpu.vector_store %arg6[%c0_12, %c0_13, %c0_14], %13 {strides = array<i32>} : memref<1x4x128xf32, #tpu.memory_space<vmem>>, vector<1x4x128xf32>,
      %c0_15 = arith.constant 0 : index
      %c0_16 = arith.constant 0 : index
      %c0_17 = arith.constant 0 : index
      %15 = vector.load %arg6[%c0_15, %c0_16, %c0_17] : memref<1x4x128xf32, #tpu.memory_space<vmem>>, vector<1x4x128xf32>
      %cst = arith.constant dense<0xFF800000> : vector<1x4xf32>
      %16 = vector.multi_reduction <maximumf>, %15, %cst [2] : vector<1x4x128xf32> to vector<1x4xf32>
      %c0_18 = arith.constant 0 : index
      %c0_19 = arith.constant 0 : index
      %17 = vector.load %arg3[%c0_18, %c0_19] : memref<4x1xf32, #tpu.memory_space<vmem>>, vector<4x1xf32>
      %cst_20 = arith.constant dense<0.000000e+00> : vector<1x1xf32>
      %18 = tpu.matmul %16, %17, %cst_20 {dimension_numbers = #tpu.dot_dimension_numbers<[1], [0], [0], [1], [0, 0, 1, 1], [], []>} : vector<1x4xf32>, vector<4x1xf32>, vector<1x1xf32> -> vector<1x1xf32>
      %cst_21 = arith.constant 0.000000e+00 : f32
      %19 = vector.broadcast %cst_21 : f32 to vector<1x1xf32>
      %20 = arith.maximumf %18, %19 : vector<1x1xf32>
      %c0_22 = arith.constant 0 : index
      %c0_23 = arith.constant 0 : index
      %21 = vector.load %arg4[%c0_22, %c0_23] : memref<1x128xf32, #tpu.memory_space<vmem>>, vector<1x128xf32>
      %cst_24 = arith.constant dense<0.000000e+00> : vector<1x128xf32>
      %22 = tpu.matmul %20, %21, %cst_24 {dimension_numbers = #tpu.dot_dimension_numbers<[1], [0], [0], [1], [0, 0, 1, 1], [], []>} : vector<1x1xf32>, vector<1x128xf32>, vector<1x128xf32> -> vector<1x128xf32>
      %23 = arith.negf %22 : vector<1x128xf32>
      %24 = math.exp %23 : vector<1x128xf32>
      %cst_25 = arith.constant 1.000000e+00 : f32
      %25 = vector.broadcast %cst_25 : f32 to vector<1x128xf32>
      %26 = arith.addf %25, %24 : vector<1x128xf32>
      %27 = arith.divf %25, %26 : vector<1x128xf32>
      %28 = vector.shape_cast %27 : vector<1x128xf32> to vector<1x1x128xf32>
      %c0_26 = arith.constant 0 : index
      %c0_27 = arith.constant 0 : index
      %c0_28 = arith.constant 0 : index
      %29 = vector.load %arg5[%c0_26, %c0_27, %c0_28] : memref<1x1x128xf32, #tpu.memory_space<vmem>>, vector<1x1x128xf32>
      tpu.vector_store %arg5[%c0_26, %c0_27, %c0_28], %28 {strides = array<i32>} : memref<1x1x128xf32, #tpu.memory_space<vmem>>, vector<1x1x128xf32>,
    } else {
    }
    return
  }
  func.func @transform_0(%arg0: i32, %arg1: i32) -> (i32, i32, i32) {
    %c0_i32 = arith.constant 0 : i32
    %c0_i32_0 = arith.constant 0 : i32
    return %arg0, %c0_i32, %arg1 : i32, i32, i32
  }
  func.func @transform_1(%arg0: i32, %arg1: i32) -> (i32, i32) {
    %c0_i32 = arith.constant 0 : i32
    %c0_i32_0 = arith.constant 0 : i32
    %c0_i32_1 = arith.constant 0 : i32
    return %c0_i32, %c0_i32_0 : i32, i32
  }
  func.func @transform_2(%arg0: i32, %arg1: i32) -> (i32, i32) {
    %c0_i32 = arith.constant 0 : i32
    %c0_i32_0 = arith.constant 0 : i32
    %c0_i32_1 = arith.constant 0 : i32
    return %c0_i32, %c0_i32_0 : i32, i32
  }
  func.func @transform_3(%arg0: i32, %arg1: i32) -> (i32, i32, i32) {
    %c0_i32 = arith.constant 0 : i32
    %c0_i32_0 = arith.constant 0 : i32
    %c0_i32_1 = arith.constant 0 : i32
    return %arg0, %c0_i32, %c0_i32_0 : i32, i32, i32
  }
}

</mosaic_0001>

<llo_original>
// kernel: tpu_custom_call.1
$region0: #{tpu_custom_call.1}
  #allocation0 [shape = 'u32[]', space=smem, size = 0x4, offset = 0x4, fixed_abs, tag = 'smem constant byte address 0x4 - core index']
  #allocation1 [shape = 'u32[144,128]{1,0:T(1,128)}', space=vmem, size = 0x12000, scoped, tag = 'internal scratch']
  #allocation2 [shape = 'f32[1,4,128]{2,1,0:T(4,128)}', space=vmem, size = 0x800, scoped, tag = 'scratch operand']
  %s0 = inlined_call_operand.hbm [shape: f32[2,4,256], index: 0, kind: input, shape index: {}]
  %s1 = inlined_call_operand.vmem [shape: f32[4,1], index: 1, kind: input, shape index: {}]
  %s2 = inlined_call_operand.vmem [shape: f32[1,128], index: 2, kind: input, shape index: {}]
  %s3 = inlined_call_operand.hbm [shape: f32[2,1,128], index: 3, kind: output, shape index: {}]
  %s4 = sld [smem:[#allocation0]]
  $region61: #{tpu_custom_call.1} parent=0
    _
  %s6 = ssub.s32 1, %s4
  %s7 = scalar_select 0, %s6, %s4
  $region1: #{tpu_custom_call.1} parent=0
    #allocation3 [shape = 'u8[8192]{0}', space=vmem, size = 0x2000, scoped, tag = 'input window, operand 0']
    #allocation4 [shape = 's32[2]{0}', space=sflag, size = 0x8, scoped, tag = 'scoped memory for tpu_custom_call.1']
    #allocation5 [shape = 's32[2]{0}', space=sflag, size = 0x8, scoped, tag = 'scoped memory for tpu_custom_call.1']
    #allocation6 [shape = 'u8[1024]{0}', space=vmem, size = 0x400, scoped, tag = 'output window, operand 0']
    %8 = vsyncpa [#allocation4], 0
    %s9 = scalar_lea.sflag [#allocation4], 1
    %10 = vsyncpa %s9, 0
    %11 = vsyncpa [#allocation5], 0
    %s12 = scalar_lea.sflag [#allocation5], 1
    %13 = vsyncpa %s12, 0
    loop: start=0, step=1, limit=4
    $region2: #{tpu_custom_call.1} parent=1 // loop_pre_header
      _
    $region3: #{tpu_custom_call.1} parent=1 // loop_header
      %s15 = sphi 0, %s19
      %p16 = scmp.ge.s32.totalorder %s15, 4
      %s22 = sphi 0, %s34
      %s23 = sphi 0, %s30
      %s24 = sphi 0, %s22
      %s25 = sphi 0, %s23
      %s26 = sphi 0, %s24
      %s27 = sphi 0, %s25
      %s39 = sphi 0, %s41
      %s42 = sphi 0, %s39
      %s43 = sphi 0, %s42
      %s59 = sphi 0, %s43
      %s63 = sphi 0, %s63
      %s65 = sphi 0, %s63
      %s66 = sphi 0, %s65
      %s80 = sphi 0, %s66
      %s84 = sphi 0, %s84
      %s86 = sphi 0, %s84
      %s87 = sphi 0, %s86
      %s101 = sphi 0, %s87
      %s107 = sphi 0, %s109
      %s110 = sphi 0, %s107
      %s111 = sphi 0, %s110
      %s127 = sphi 0, %s111
    $region4: #{tpu_custom_call.1} parent=1 // loop_header_branch
      %18 = sbr.rel (%p16) target = $region8
    $region5: #{tpu_custom_call.1} parent=1 // loop_body
      %s20 = ssub.s32 %s15, 1
      %s21 = ssub.s32 %s15, 2
      %s28 = sadd.s32 1, %s23
      %p29 = scmp.ge.s32.totalorder %s28, 1
      %s30 = scalar_select %p29, 0, %s28
      %s31 = sadd.s32 1, %s22
      %s32 = scalar_select %p29, %s31, %s22
      %p33 = scmp.ge.s32.totalorder %s32, 2
      %s34 = scalar_select %p33, 0, %s32
      %s35 = ssub.s32 %s22, %s34
      %s36 = ssub.s32 %s23, %s30
      %s37 = sor.u32 %s35, %s36
      %p38 = scmp.eq.s32.totalorder %s37, 0
      %s40 = sadd.s32 %s39, 1
      %s41 = scalar_select %p38, %s39, %s40
      %p44 = pneg %p38
      %p45 = scmp.eq.s32.totalorder %s15, 1
      %p46 = por %p44, %p45
      %p47 = scmp.ne.s32.totalorder %s39, %s42
      %p48 = scmp.eq.s32.totalorder %s15, 0
      %p49 = por %p47, %p48
      %p50 = scmp.ne.s32.totalorder %s39, %s42
      %p51 = scmp.eq.s32.totalorder %s20, 1
      %p52 = por %p50, %p51
      %p53 = scmp.ne.s32.totalorder %s42, %s43
      %p54 = scmp.eq.s32.totalorder %s20, 0
      %p55 = por %p53, %p54
      %p56 = scmp.ne.s32.totalorder %s42, %s43
      %p57 = scmp.eq.s32.totalorder %s21, 1
      %p58 = por %p56, %p57
      %p60 = scmp.ne.s32.totalorder %s43, %s59
      %p61 = scmp.eq.s32.totalorder %s21, 0
      %p62 = por %p60, %p61
      %s64 = sadd.s32 %s63, 1
      %p67 = scmp.eq.s32.totalorder %s15, 1
      %p68 = scmp.ne.s32.totalorder %s63, %s65
      %p69 = scmp.eq.s32.totalorder %s15, 0
      %p70 = por %p68, %p69
      %p71 = scmp.ne.s32.totalorder %s63, %s65
      %p72 = scmp.eq.s32.totalorder %s20, 1
      %p73 = por %p71, %p72
      %p74 = scmp.ne.s32.totalorder %s65, %s66
      %p75 = scmp.eq.s32.totalorder %s20, 0
      %p76 = por %p74, %p75
      %p77 = scmp.ne.s32.totalorder %s65, %s66
      %p78 = scmp.eq.s32.totalorder %s21, 1
      %p79 = por %p77, %p78
      %p81 = scmp.ne.s32.totalorder %s66, %s80
      %p82 = scmp.eq.s32.totalorder %s21, 0
      %p83 = por %p81, %p82
      %s85 = sadd.s32 %s84, 1
      %p88 = scmp.eq.s32.totalorder %s15, 1
      %p89 = scmp.ne.s32.totalorder %s84, %s86
      %p90 = scmp.eq.s32.totalorder %s15, 0
      %p91 = por %p89, %p90
      %p92 = scmp.ne.s32.totalorder %s84, %s86
      %p93 = scmp.eq.s32.totalorder %s20, 1
      %p94 = por %p92, %p93
      %p95 = scmp.ne.s32.totalorder %s86, %s87
      %p96 = scmp.eq.s32.totalorder %s20, 0
      %p97 = por %p95, %p96
      %p98 = scmp.ne.s32.totalorder %s86, %s87
      %p99 = scmp.eq.s32.totalorder %s21, 1
      %p100 = por %p98, %p99
      %p102 = scmp.ne.s32.totalorder %s87, %s101
      %p103 = scmp.eq.s32.totalorder %s21, 0
      %p104 = por %p102, %p103
      %s105 = ssub.s32 %s22, %s34
      %p106 = scmp.eq.s32.totalorder %s105, 0
      %s108 = sadd.s32 %s107, 1
      %s109 = scalar_select %p106, %s107, %s108
      %p112 = pneg %p106
      %p113 = scmp.eq.s32.totalorder %s15, 1
      %p114 = por %p112, %p113
      %p115 = scmp.ne.s32.totalorder %s107, %s110
      %p116 = scmp.eq.s32.totalorder %s15, 0
      %p117 = por %p115, %p116
      %p118 = scmp.ne.s32.totalorder %s107, %s110
      %p119 = scmp.eq.s32.totalorder %s20, 1
      %p120 = por %p118, %p119
      %p121 = scmp.ne.s32.totalorder %s110, %s111
      %p122 = scmp.eq.s32.totalorder %s20, 0
      %p123 = por %p121, %p122
      %p124 = scmp.ne.s32.totalorder %s110, %s111
      %p125 = scmp.eq.s32.totalorder %s21, 1
      %p126 = por %p124, %p125
      %p128 = scmp.ne.s32.totalorder %s111, %s127
      %p129 = scmp.eq.s32.totalorder %s21, 0
      %p130 = por %p128, %p129
      %p131 = scmp.le.s32.totalorder 1, %s15
      %p132 = scmp.lt.s32.totalorder %s15, 3
      %p133 = pnand %p131, %p132
      %p134 = pneg %p133
      // Predicated region
      $region9: #{tpu_custom_call.1} parent=5 // pred_check
        _
      $region10: #{tpu_custom_call.1} parent=5 // pred_check_branch
        %136 = sbr.rel (%p133) target = $region12
      $region11: #{tpu_custom_call.1} parent=5 // pred_region
        %s137 = ssub.s32 %s15, 1
        // Predicated region
        $region13: #{tpu_custom_call.1} parent=11 // pred_check
          %p138 = pneg %p76
        $region14: #{tpu_custom_call.1} parent=11 // pred_check_branch
          %140 = sbr.rel (%p138) target = $region16
        $region15: #{tpu_custom_call.1} parent=11 // pred_region
          _
        $region16: #{tpu_custom_call.1} parent=11 // pred_fallthru
          _
        // Predicated region
        $region17: #{tpu_custom_call.1} parent=11 // pred_check
          %p141 = pneg %p97
        $region18: #{tpu_custom_call.1} parent=11 // pred_check_branch
          %143 = sbr.rel (%p141) target = $region20
        $region19: #{tpu_custom_call.1} parent=11 // pred_region
          _
        $region20: #{tpu_custom_call.1} parent=11 // pred_fallthru
          _
      $region12: #{tpu_custom_call.1} parent=5 // pred_fallthru
        _
      %p144 = scmp.lt.s32.totalorder %s15, 2
      // Predicated region
      $region21: #{tpu_custom_call.1} parent=5 // pred_check
        %p145 = pneg %p144
      $region22: #{tpu_custom_call.1} parent=5 // pred_check_branch
        %147 = sbr.rel (%p145) target = $region24
      $region23: #{tpu_custom_call.1} parent=5 // pred_region
        // Predicated region
        $region25: #{tpu_custom_call.1} parent=23 // pred_check
          %p148 = pneg %p49
        $region26: #{tpu_custom_call.1} parent=23 // pred_check_branch
          %150 = sbr.rel (%p148) target = $region28
        $region27: #{tpu_custom_call.1} parent=23 // pred_region
          %s151 = sand.u32 %s39, 1
          %s152 = scalar_lea.sflag [#allocation4], %s151
          %s153 = sand.u32 %s39, 1
          %s154 = smul.addr %s153, 8
          %s155 = scalar_lea.vmem [#allocation3], %s154
          %s156 = smul.u32 2, %s23
          %s158 = ssub.s32 128, 128
          %159 = vsyncadd %s152, %s158
          %s160 = smul.addr %s22, 2
          %s161 = sadd.s32 %s156, %s160
          %s162 = smul.addr %s161, 64
          %s163 = scalar_lea.hbm %s0, %s162
          %s165 = sshll.u32 %s155, 4
          %s166 = int_to_ptr.vmem [resolvable:$true] %s165
          %168 = dma.hbm_to_vmem [thread:$0]  %s163, 128, %s166, %s152
        $region28: #{tpu_custom_call.1} parent=23 // pred_fallthru
          _
      $region24: #{tpu_custom_call.1} parent=5 // pred_fallthru
        _
      %p169 = scmp.le.s32.totalorder 1, %s15
      %p170 = scmp.lt.s32.totalorder %s15, 3
      %p171 = pnand %p169, %p170
      %p172 = pneg %p171
      // Predicated region
      $region29: #{tpu_custom_call.1} parent=5 // pred_check
        _
      $region30: #{tpu_custom_call.1} parent=5 // pred_check_branch
        %174 = sbr.rel (%p171) target = $region32
      $region31: #{tpu_custom_call.1} parent=5 // pred_region
        %s175 = ssub.s32 %s15, 1
        %s176 = sand.u32 %s42, 1
        %s177 = scalar_lea.sflag [#allocation4], %s176
        %s178 = sand.u32 %s42, 1
        %s179 = smul.addr %s178, 8
        %s180 = scalar_lea.vmem [#allocation3], %s179
        // Predicated region
        $region33: #{tpu_custom_call.1} parent=31 // pred_check
          %p181 = pneg %p55
        $region34: #{tpu_custom_call.1} parent=31 // pred_check_branch
          %183 = sbr.rel (%p181) target = $region36
        $region35: #{tpu_custom_call.1} parent=31 // pred_region
          %184 = dma.done %s177, 128
        $region36: #{tpu_custom_call.1} parent=31 // pred_fallthru
          _
        %s185 = sand.u32 %s42, 1
        %s186 = scalar_lea.sflag [#allocation4], %s185
        %s187 = sand.u32 %s42, 1
        %s188 = smul.addr %s187, 8
        %s189 = scalar_lea.vmem [#allocation3], %s188
        %p190 = pneg %p55
        %p191 = pneg %p52
        %p192 = pneg %p76
        %p193 = pneg %p73
        %p194 = pneg %p97
        %p195 = pneg %p94
        %p196 = pneg %p123
        %p197 = pneg %p120
        %s198 = sand.u32 %s110, 1
        %s199 = scalar_lea.sflag [#allocation5], %s198
        %s200 = sand.u32 %s110, 1
        %s201 = scalar_lea.vmem [#allocation6], %s200
        %s202 = smul.u32 2, %s25
        %p203 = scmp.eq.s32.totalorder %s25, 0
        // Predicated region
        $region37: #{tpu_custom_call.1} parent=31 // pred_check
          %p204 = pneg %p203
        $region38: #{tpu_custom_call.1} parent=31 // pred_check_branch
          %206 = sbr.rel (%p204) target = $region40
        $region39: #{tpu_custom_call.1} parent=31 // pred_region
          %207 = vst [vmem:[#allocation2] sm:$0xf] -3.4028235e+38
        $region40: #{tpu_custom_call.1} parent=31 // pred_fallthru
          _
        %p208 = scmp.lt.s32.totalorder %s25, 0
        // Predicated region
        $region41: #{tpu_custom_call.1} parent=31 // pred_check
          %p209 = pneg %p208
        $region42: #{tpu_custom_call.1} parent=31 // pred_check_branch
          %211 = sbr.rel (%p209) target = $region44
        $region43: #{tpu_custom_call.1} parent=31 // pred_region
          %v212 = vld [vmem:[#allocation2] sm:$0xf]
          %v213 = vld [vmem:[%s180] sm:$0xf]
          %v214 = vmax.f32 %v212, %v213
          %v215 = vld [vmem:[%s180 + $0x4] sm:$0xf]
          %v216 = vmax.f32 %v214, %v215
          %217 = vst [vmem:[#allocation2] sm:$0xf] %v216
        $region44: #{tpu_custom_call.1} parent=31 // pred_fallthru
          _
        // Predicated region
        $region45: #{tpu_custom_call.1} parent=31 // pred_check
          %p218 = pneg %p203
        $region46: #{tpu_custom_call.1} parent=31 // pred_check_branch
          %220 = sbr.rel (%p218) target = $region48
        $region47: #{tpu_custom_call.1} parent=31 // pred_region
          %v221 = vld [vmem:[#allocation2] sm:$0xf]
          %v222 = vld [vmem:[%s180] sm:$0xf]
          %v223 = vmax.f32 %v221, %v222
          %v224 = vld [vmem:[%s180 + $0x4] sm:$0xf]
          %v225 = vmax.f32 %v223, %v224
          %226 = vst [vmem:[#allocation2] sm:$0xf] %v225
          %v227 = vld [vmem:[#allocation2] sm:$0xf]
          %vm228 = vcmask 1043456
          %v229 = vsel %vm228, %v227, -inf
          %230 = vmax.xlane.f32.xlu0 %v229
          %v231 = vpop.xlane.xlu0 %230
          %v232 = vld [vmem:[%s1] sm:$0xf]
          %v234 = vlaneseq
          %v235 = vand.u32 %v234, 127
          %v236 = vlaneseq
          %v237 = vshrl.u32 %v236, 7
          %v238 = vsub.s32 %v235, %v237
          %v239 = vrot.slane %v231, %v238
          %vm240 = vcmask 31744
          %v241 = vsel %vm240, %v239, 0
          %v244 = vsel %vm228, %v232, 0
          %246 = vmatprep.subr.mxu0 0.0
          %247 = vmatpush1.msra.mxu0 %v244
          %248 = vmatprep.subr.mxu0 0.0
          %249 = vmatpush1.msra.mxu0 0.0
          %250 = vmatprep.subr.mxu0 0.0
          %251 = vmatpush1.msra.mxu0 0.0
          %252 = vmatprep.subr.mxu0 0.0
          %253 = vmatpush1.msra.mxu0 0.0
          %254 = vmatprep.subr.mxu0 0.0
          %255 = vmatpush1.msra.mxu0 0.0
          %256 = vmatprep.subr.mxu0 0.0
          %257 = vmatpush1.msra.mxu0 0.0
          %258 = vmatprep.subr.mxu0 0.0
          %259 = vmatpush1.msra.mxu0 0.0
          %260 = vmatprep.subr.mxu0 0.0
          %261 = vmatpush1.msra.mxu0 0.0
          %262 = vmatprep.subr.mxu0 0.0
          %263 = vmatpush1.msra.mxu0 0.0
          %264 = vmatprep.subr.mxu0 0.0
          %265 = vmatpush1.msra.mxu0 0.0
          %266 = vmatprep.subr.mxu0 0.0
          %267 = vmatpush1.msra.mxu0 0.0
          %268 = vmatprep.subr.mxu0 0.0
          %269 = vmatpush1.msra.mxu0 0.0
          %270 = vmatprep.subr.mxu0 0.0
          %271 = vmatpush1.msra.mxu0 0.0
          %272 = vmatprep.subr.mxu0 0.0
          %273 = vmatpush1.msra.mxu0 0.0
          %274 = vmatprep.subr.mxu0 0.0
          %275 = vmatpush1.msra.mxu0 0.0
          %276 = vmatprep.subr.mxu0 0.0
          %277 = vmatpush1.msra.mxu0 0.0
          %278 = vmatprep.subr.mxu0 0.0
          %279 = vmatpush1.msra.mxu0 0.0
          %280 = vmatprep.subr.mxu0 0.0
          %281 = vmatpush1.msra.mxu0 0.0
          %282 = vmatprep.subr.mxu0 0.0
          %283 = vmatpush1.msra.mxu0 0.0
          %284 = vmatprep.subr.mxu0 0.0
          %285 = vmatpush1.msra.mxu0 0.0
          %286 = vmatprep.subr.mxu0 0.0
          %287 = vmatpush1.msra.mxu0 0.0
          %288 = vmatprep.subr.mxu0 0.0
          %289 = vmatpush1.msra.mxu0 0.0
          %290 = vmatprep.subr.mxu0 0.0
          %291 = vmatpush1.msra.mxu0 0.0
          %292 = vmatprep.subr.mxu0 0.0
          %293 = vmatpush1.msra.mxu0 0.0
          %294 = vmatprep.subr.mxu0 0.0
          %295 = vmatpush1.msra.mxu0 0.0
          %296 = vmatprep.subr.mxu0 0.0
          %297 = vmatpush1.msra.mxu0 0.0
          %298 = vmatprep.subr.mxu0 0.0
          %299 = vmatpush1.msra.mxu0 0.0
          %300 = vmatprep.subr.mxu0 0.0
          %301 = vmatpush1.msra.mxu0 0.0
          %302 = vmatprep.subr.mxu0 0.0
          %303 = vmatpush1.msra.mxu0 0.0
          %304 = vmatprep.subr.mxu0 0.0
          %305 = vmatpush1.msra.mxu0 0.0
          %306 = vmatprep.subr.mxu0 0.0
          %307 = vmatpush1.msra.mxu0 0.0
          %308 = vmatprep.subr.mxu0 0.0
          %309 = vmatpush1.msra.mxu0 0.0
          %310 = vmatprep.mubr.f32.mxu0 0.0
          %311 = vmatmul.mubr.f32.gmra.mrb[0].mxu0 %v241
          %v312 = vpop.f32.mrb[0].mxu0
          %v313 = vadd.f32 0.0, %v312
          %v314 = vpop.f32.mrb[0].mxu0
          %315 = vdwg.mxu0
          %v316 = vmax.f32 %v313, 0.0
          %v317 = vld [vmem:[%s2] sm:$0x1]
          %vm318 = vcmask 7168
          %v320 = vsel %vm318, %v316, 0
          %vm322 = vcmask 1040384
          %v324 = vsel %vm322, %v317, 0
          %326 = vmatprep.subr.mxu0 0.0
          %327 = vmatpush1.msra.mxu0 %v324
          %328 = vmatprep.subr.mxu0 0.0
          %329 = vmatpush1.msra.mxu0 0.0
          %330 = vmatprep.subr.mxu0 0.0
          %331 = vmatpush1.msra.mxu0 0.0
          %332 = vmatprep.subr.mxu0 0.0
          %333 = vmatpush1.msra.mxu0 0.0
          %334 = vmatprep.subr.mxu0 0.0
          %335 = vmatpush1.msra.mxu0 0.0
          %336 = vmatprep.subr.mxu0 0.0
          %337 = vmatpush1.msra.mxu0 0.0
          %338 = vmatprep.subr.mxu0 0.0
          %339 = vmatpush1.msra.mxu0 0.0
          %340 = vmatprep.subr.mxu0 0.0
          %341 = vmatpush1.msra.mxu0 0.0
          %342 = vmatprep.subr.mxu0 0.0
          %343 = vmatpush1.msra.mxu0 0.0
          %344 = vmatprep.subr.mxu0 0.0
          %345 = vmatpush1.msra.mxu0 0.0
          %346 = vmatprep.subr.mxu0 0.0
          %347 = vmatpush1.msra.mxu0 0.0
          %348 = vmatprep.subr.mxu0 0.0
          %349 = vmatpush1.msra.mxu0 0.0
          %350 = vmatprep.subr.mxu0 0.0
          %351 = vmatpush1.msra.mxu0 0.0
          %352 = vmatprep.subr.mxu0 0.0
          %353 = vmatpush1.msra.mxu0 0.0
          %354 = vmatprep.subr.mxu0 0.0
          %355 = vmatpush1.msra.mxu0 0.0
          %356 = vmatprep.subr.mxu0 0.0
          %357 = vmatpush1.msra.mxu0 0.0
          %358 = vmatprep.subr.mxu0 0.0
          %359 = vmatpush1.msra.mxu0 0.0
          %360 = vmatprep.subr.mxu0 0.0
          %361 = vmatpush1.msra.mxu0 0.0
          %362 = vmatprep.subr.mxu0 0.0
          %363 = vmatpush1.msra.mxu0 0.0
          %364 = vmatprep.subr.mxu0 0.0
          %365 = vmatpush1.msra.mxu0 0.0
          %366 = vmatprep.subr.mxu0 0.0
          %367 = vmatpush1.msra.mxu0 0.0
          %368 = vmatprep.subr.mxu0 0.0
          %369 = vmatpush1.msra.mxu0 0.0
          %370 = vmatprep.subr.mxu0 0.0
          %371 = vmatpush1.msra.mxu0 0.0
          %372 = vmatprep.subr.mxu0 0.0
          %373 = vmatpush1.msra.mxu0 0.0
          %374 = vmatprep.subr.mxu0 0.0
          %375 = vmatpush1.msra.mxu0 0.0
          %376 = vmatprep.subr.mxu0 0.0
          %377 = vmatpush1.msra.mxu0 0.0
          %378 = vmatprep.subr.mxu0 0.0
          %379 = vmatpush1.msra.mxu0 0.0
          %380 = vmatprep.subr.mxu0 0.0
          %381 = vmatpush1.msra.mxu0 0.0
          %382 = vmatprep.subr.mxu0 0.0
          %383 = vmatpush1.msra.mxu0 0.0
          %384 = vmatprep.subr.mxu0 0.0
          %385 = vmatpush1.msra.mxu0 0.0
          %386 = vmatprep.subr.mxu0 0.0
          %387 = vmatpush1.msra.mxu0 0.0
          %388 = vmatprep.subr.mxu0 0.0
          %389 = vmatpush1.msra.mxu0 0.0
          %390 = vmatprep.mubr.f32.mxu0 0.0
          %391 = vmatmul.mubr.f32.gmra.mrb[0].mxu0 %v320
          %v392 = vpop.f32.mrb[0].mxu0
          %v393 = vadd.f32 0.0, %v392
          %v394 = vpop.f32.mrb[0].mxu0
          %395 = vdwg.mxu0
          %v396 = vxor.u32 %v393, 2147483648
          %v397 = vmul.f32 %v396, 1.442695
          %v398 = vpow.pop %v397
          %v399 = vadd.f32 %v398, 1.0
          %v400 = vrcp.pop %v399
          %v401 = vmul.f32 1.0, %v400
          %402 = vst [vmem:[%s201] sm:$0x1] %v401
        $region48: #{tpu_custom_call.1} parent=31 // pred_fallthru
          _
        %s403 = sand.u32 %s110, 1
        %s404 = scalar_lea.sflag [#allocation5], %s403
        %s405 = sand.u32 %s110, 1
        %s406 = scalar_lea.vmem [#allocation6], %s405
        // Predicated region
        $region49: #{tpu_custom_call.1} parent=31 // pred_check
          %p407 = pneg %p120
        $region50: #{tpu_custom_call.1} parent=31 // pred_check_branch
          %409 = sbr.rel (%p407) target = $region52
        $region51: #{tpu_custom_call.1} parent=31 // pred_region
          %s411 = ssub.s32 16, 16
          %412 = vsyncadd %s404, %s411
          %s413 = smul.addr %s24, 16
          %s414 = scalar_lea.hbm %s3, %s413
          %s416 = sshll.u32 %s406, 4
          %s417 = int_to_ptr.vmem [resolvable:$true] %s416
          %419 = dma.vmem_to_hbm [thread:$0]  %s417, 16, %s414, %s404
        $region52: #{tpu_custom_call.1} parent=31 // pred_fallthru
          _
      $region32: #{tpu_custom_call.1} parent=5 // pred_fallthru
        _
      %p420 = scmp.le.s32.totalorder 2, %s15
      // Predicated region
      $region53: #{tpu_custom_call.1} parent=5 // pred_check
        %p421 = pneg %p420
      $region54: #{tpu_custom_call.1} parent=5 // pred_check_branch
        %423 = sbr.rel (%p421) target = $region56
      $region55: #{tpu_custom_call.1} parent=5 // pred_region
        %s424 = ssub.s32 %s15, 2
        // Predicated region
        $region57: #{tpu_custom_call.1} parent=55 // pred_check
          %p425 = pneg %p126
        $region58: #{tpu_custom_call.1} parent=55 // pred_check_branch
          %427 = sbr.rel (%p425) target = $region60
        $region59: #{tpu_custom_call.1} parent=55 // pred_region
          %s428 = sand.u32 %s111, 1
          %s429 = scalar_lea.sflag [#allocation5], %s428
          %s430 = sand.u32 %s111, 1
          %s431 = scalar_lea.vmem [#allocation6], %s430
          %432 = dma.done %s429, 16
        $region60: #{tpu_custom_call.1} parent=55 // pred_fallthru
          _
      $region56: #{tpu_custom_call.1} parent=5 // pred_fallthru
        _
    $region6: #{tpu_custom_call.1} parent=1 // loop_footer
      %s19 = sadd.s32 1, %s15
    $region7: #{tpu_custom_call.1} parent=1 // loop_footer_branch
      %14 = sbr.rel target = $region3
    $region8: #{tpu_custom_call.1} parent=1 // loop_exit
      _
    %433 = vsyncpa [#allocation4], 1
    %s434 = scalar_lea.sflag [#allocation4], 1
    %435 = vsyncpa %s434, 1
    %436 = vsyncpa [#allocation5], 1
    %s437 = scalar_lea.sflag [#allocation5], 1
    %438 = vsyncpa %s437, 1

</llo_original>
